<compile_context>
chip_gen: v7x
topology: tpu7x:2x2x1
jax: 0.10.0
libtpu: 0.0.40
codegen_flags: <defaults>
</compile_context>

<pallas_src>
import functools

import jax
import jax.numpy as jnp
from jax.experimental import pallas as pl
from jax.experimental.pallas import tpu as pltpu

_LANE = 128
_SUBLANE = 8
_MIN_SPLIT_ROWS = 512  # batches at least this big get >= 2 grid steps (v7x megacore)


def _round_up(v, k):
    return (v + k - 1) // k * k


def _cdiv(a, b):
    return -(-a // b)


def _mlp_kernel(x_ref, w1_ref, b1_ref, w2_ref, b2_ref, w3_ref, b3_ref, o_ref):
    # Cast x to the weight dtype inside the kernel (no-op for f32 weights; a
    # cheap VPU pack for bf16 weights — the kernel is DMA-bound, VALU has slack).
    x = x_ref[...].astype(w1_ref.dtype)
    # Linear(in -> h0) on the MXU, f32 accumulation.
    h = jnp.dot(x, w1_ref[...], preferred_element_type=jnp.float32)
    h = jnp.maximum(h + b1_ref[...], 0.0)            # bias + ReLU in f32 (VPU)
    # Linear(h0 -> h1)
    h = jnp.dot(h.astype(w2_ref.dtype), w2_ref[...],
                preferred_element_type=jnp.float32)
    h = jnp.maximum(h + b2_ref[...], 0.0)
    # Linear(h1 -> out); final_activation=None -> no activation
    o = jnp.dot(h.astype(w3_ref.dtype), w3_ref[...],
                preferred_element_type=jnp.float32)
    o_ref[...] = (o + b3_ref[...]).astype(o_ref.dtype)


def prepare_params(params, weight_dtype=jnp.float32):
    """One-time padding / casting of the MLP parameters (hoisted out of the
    per-call path). Hidden feature dims are zero-padded to multiples of 128 so
    intermediate activations are lane-dense; W1's input dim and W3's output dim
    stay unpadded (their blocks cover the full array dims)."""
    (w1, b1), (w2, b2), (w3, b3) = params
    h0, h1 = w1.shape[1], w2.shape[1]
    h0_p, h1_p = _round_up(h0, _LANE), _round_up(h1, _LANE)

    def pad2(a, rows_p, cols_p, dtype):
        return jnp.pad(a, ((0, rows_p - a.shape[0]),
                           (0, cols_p - a.shape[1]))).astype(dtype)

    w1_p = pad2(w1, w1.shape[0], h0_p, weight_dtype)
    b1_p = pad2(b1, 1, h0_p, jnp.float32)
    w2_p = pad2(w2, h0_p, h1_p, weight_dtype)
    b2_p = pad2(b2, 1, h1_p, jnp.float32)
    w3_p = pad2(w3, h1_p, w3.shape[1], weight_dtype)
    b3_p = b3.astype(jnp.float32)
    return (w1_p, b1_p, w2_p, b2_p, w3_p, b3_p)


@functools.partial(jax.jit, static_argnames=("tile_m",))
def feedforward_pallas(x, prepared, *, tile_m=1024):
    """Fused 3-layer MLP (Linear-ReLU-Linear-ReLU-Linear), tiled over batch rows."""
    w1_p, b1_p, w2_p, b2_p, w3_p, b3_p = prepared
    m, in_dim = x.shape
    h0_p, h1_p = w1_p.shape[1], w2_p.shape[1]
    out_dim = w3_p.shape[1]
    assert w1_p.shape[0] == in_dim

    # ---- even row tiling; >= 2 steps for large batches (v7x has 2 TCs) ------
    steps = max(1, _cdiv(m, tile_m))
    if steps == 1 and m >= _MIN_SPLIT_ROWS:
        steps = 2
    tile = _round_up(_cdiv(m, steps), _SUBLANE)
    m_p = steps * tile
    grid = (steps,)

    # Row padding only (at most tile-1 rows thanks to even tiling); feature dim
    # is NOT padded and x is NOT cast in the wrapper.
    x_p = x if m_p == m else jnp.pad(x, ((0, m_p - m), (0, 0)))

    full = lambda i: (0, 0)  # weights/biases resident across all grid steps

    out = pl.pallas_call(
        _mlp_kernel,
        out_shape=jax.ShapeDtypeStruct((m_p, out_dim), x.dtype),
        grid_spec=pltpu.PrefetchScalarGridSpec(
            num_scalar_prefetch=0,
            grid=grid,
            in_specs=[
                pl.BlockSpec((tile, in_dim), lambda i: (i, 0)),   # x tile (unpadded features)
                pl.BlockSpec((in_dim, h0_p), full),               # W1
                pl.BlockSpec((1, h0_p), full),                    # b1
                pl.BlockSpec((h0_p, h1_p), full),                 # W2
                pl.BlockSpec((1, h1_p), full),                    # b2
                pl.BlockSpec((h1_p, out_dim), full),              # W3
                pl.BlockSpec((1, out_dim), full),                 # b3
            ],
            out_specs=pl.BlockSpec((tile, out_dim), lambda i: (i, 0)),
        ),
        compiler_params=pltpu.CompilerParams(
            dimension_semantics=("parallel",),
            vmem_limit_bytes=32 * 1024 * 1024,
        ),
    )(x_p, w1_p, b1_p, w2_p, b2_p, w3_p, b3_p)

    return out if m_p == m else out[:m]


def init_linear(key, fan_in, fan_out, dtype=jnp.float32):
    """PyTorch nn.Linear default init (uniform +-1/sqrt(fan_in)); weight stored
    transposed as (in_features, out_features) so the kernel computes x @ W + b."""
    kw, kb = jax.random.split(key)
    bound = 1.0 / (fan_in ** 0.5)
    w = jax.random.uniform(kw, (fan_in, fan_out), dtype, -bound, bound)
    b = jax.random.uniform(kb, (1, fan_out), dtype, -bound, bound)
    return w, b


def feedforward_ref(x, params):
    (w1, b1), (w2, b2), (w3, b3) = params
    h = jnp.maximum(x @ w1 + b1, 0.0)
    h = jnp.maximum(h @ w2 + b2, 0.0)
    return h @ w3 + b3


if __name__ == "__main__":
    # Module config: FeedForward(in_dim=32, hidden_dims=[64, 64], out_dim=32,
    #                            activation=ReLU(), final_activation=None)
    in_dim, hidden_dims, out_dim = 32, [64, 64], 32
    batch = 16

    key = jax.random.PRNGKey(0)
    kx, k1, k2, k3, kx2 = jax.random.split(key, 5)

    x = jax.random.normal(kx, (batch, in_dim), jnp.float32)
    params = (
        init_linear(k1, in_dim, hidden_dims[0]),
        init_linear(k2, hidden_dims[0], hidden_dims[1]),
        init_linear(k3, hidden_dims[1], out_dim),
    )
    # Weight padding / cast hoisted out of the per-call path (f32 = bit-faithful).
    prepared = prepare_params(params, weight_dtype=jnp.float32)

    # --- small batch: single grid step ---------------------------------------
    out = feedforward_pallas(x, prepared)
    out = jax.block_until_ready(out)
    assert out.shape == (batch, out_dim)
    ref = feedforward_ref(x, params)
    assert jnp.allclose(out, ref, atol=2e-2, rtol=2e-2), "small-batch mismatch"

    # --- larger batch: exercises even tiling, row padding, grid >= 2 ----------
    batch2 = 600
    x2 = jax.random.normal(kx2, (batch2, in_dim), jnp.float32)
    out2 = feedforward_pallas(x2, prepared)
    out2 = jax.block_until_ready(out2)
    assert out2.shape == (batch2, out_dim)
    ref2 = feedforward_ref(x2, params)
    assert jnp.allclose(out2, ref2, atol=2e-2, rtol=2e-2), "large-batch mismatch"

    print("KERNEL_OK")
</pallas_src>

<mosaic_0001>
module attributes {stable_mosaic.version = 11 : i64} {
  func.func @_mlp_kernel(%arg0: i32, %arg1: memref<16x32xf32, #tpu.memory_space<vmem>>, %arg2: memref<32x128xf32, #tpu.memory_space<vmem>>, %arg3: memref<1x128xf32, #tpu.memory_space<vmem>>, %arg4: memref<128x128xf32, #tpu.memory_space<vmem>>, %arg5: memref<1x128xf32, #tpu.memory_space<vmem>>, %arg6: memref<128x32xf32, #tpu.memory_space<vmem>>, %arg7: memref<1x32xf32, #tpu.memory_space<vmem>>, %arg8: memref<16x32xf32, #tpu.memory_space<vmem>>) attributes {dimension_semantics = [#tpu.dimension_semantics<parallel>], iteration_bounds = array<i64: 1>, scalar_prefetch = 0 : i64, scratch_operands = 0 : i64, tpu.core_type = #tpu.core_type<tc>, window_params = [{transform_indices = @transform_0, window_bounds = array<i64: 16, 32>}, {pipeline_mode = #tpu.pipeline_mode<synchronous>, transform_indices = @transform_1, window_bounds = array<i64: 32, 128>}, {pipeline_mode = #tpu.pipeline_mode<synchronous>, transform_indices = @transform_2, window_bounds = array<i64: 1, 128>}, {pipeline_mode = #tpu.pipeline_mode<synchronous>, transform_indices = @transform_3, window_bounds = array<i64: 128, 128>}, {pipeline_mode = #tpu.pipeline_mode<synchronous>, transform_indices = @transform_4, window_bounds = array<i64: 1, 128>}, {pipeline_mode = #tpu.pipeline_mode<synchronous>, transform_indices = @transform_5, window_bounds = array<i64: 128, 32>}, {pipeline_mode = #tpu.pipeline_mode<synchronous>, transform_indices = @transform_6, window_bounds = array<i64: 1, 32>}, {transform_indices = @transform_7, window_bounds = array<i64: 16, 32>}]} {
    %c0 = arith.constant 0 : index
    %c0_0 = arith.constant 0 : index
    %0 = vector.load %arg1[%c0, %c0_0] : memref<16x32xf32, #tpu.memory_space<vmem>>, vector<16x32xf32>
    %c0_1 = arith.constant 0 : index
    %c0_2 = arith.constant 0 : index
    %1 = vector.load %arg2[%c0_1, %c0_2] : memref<32x128xf32, #tpu.memory_space<vmem>>, vector<32x128xf32>
    %cst = arith.constant dense<0.000000e+00> : vector<16x128xf32>
    %2 = tpu.matmul %0, %1, %cst {dimension_numbers = #tpu.dot_dimension_numbers<[1], [0], [0], [1], [0, 0, 1, 1], [], []>} : vector<16x32xf32>, vector<32x128xf32>, vector<16x128xf32> -> vector<16x128xf32>
    %c0_3 = arith.constant 0 : index
    %c0_4 = arith.constant 0 : index
    %3 = vector.load %arg3[%c0_3, %c0_4] : memref<1x128xf32, #tpu.memory_space<vmem>>, vector<1x128xf32>
    %4 = vector.broadcast %3 : vector<1x128xf32> to vector<16x128xf32>
    %5 = arith.addf %2, %4 : vector<16x128xf32>
    %cst_5 = arith.constant 0.000000e+00 : f32
    %6 = vector.broadcast %cst_5 : f32 to vector<16x128xf32>
    %7 = arith.maximumf %5, %6 : vector<16x128xf32>
    %c0_6 = arith.constant 0 : index
    %c0_7 = arith.constant 0 : index
    %8 = vector.load %arg4[%c0_6, %c0_7] : memref<128x128xf32, #tpu.memory_space<vmem>>, vector<128x128xf32>
    %cst_8 = arith.constant dense<0.000000e+00> : vector<16x128xf32>
    %9 = tpu.matmul %7, %8, %cst_8 {dimension_numbers = #tpu.dot_dimension_numbers<[1], [0], [0], [1], [0, 0, 1, 1], [], []>} : vector<16x128xf32>, vector<128x128xf32>, vector<16x128xf32> -> vector<16x128xf32>
    %c0_9 = arith.constant 0 : index
    %c0_10 = arith.constant 0 : index
    %10 = vector.load %arg5[%c0_9, %c0_10] : memref<1x128xf32, #tpu.memory_space<vmem>>, vector<1x128xf32>
    %11 = vector.broadcast %10 : vector<1x128xf32> to vector<16x128xf32>
    %12 = arith.addf %9, %11 : vector<16x128xf32>
    %cst_11 = arith.constant 0.000000e+00 : f32
    %13 = vector.broadcast %cst_11 : f32 to vector<16x128xf32>
    %14 = arith.maximumf %12, %13 : vector<16x128xf32>
    %c0_12 = arith.constant 0 : index
    %c0_13 = arith.constant 0 : index
    %15 = vector.load %arg6[%c0_12, %c0_13] : memref<128x32xf32, #tpu.memory_space<vmem>>, vector<128x32xf32>
    %cst_14 = arith.constant dense<0.000000e+00> : vector<16x32xf32>
    %16 = tpu.matmul %14, %15, %cst_14 {dimension_numbers = #tpu.dot_dimension_numbers<[1], [0], [0], [1], [0, 0, 1, 1], [], []>} : vector<16x128xf32>, vector<128x32xf32>, vector<16x32xf32> -> vector<16x32xf32>
    %c0_15 = arith.constant 0 : index
    %c0_16 = arith.constant 0 : index
    %17 = vector.load %arg7[%c0_15, %c0_16] : memref<1x32xf32, #tpu.memory_space<vmem>>, vector<1x32xf32>
    %18 = vector.broadcast %17 : vector<1x32xf32> to vector<16x32xf32>
    %19 = arith.addf %16, %18 : vector<16x32xf32>
    %c0_17 = arith.constant 0 : index
    %c0_18 = arith.constant 0 : index
    %20 = vector.load %arg8[%c0_17, %c0_18] : memref<16x32xf32, #tpu.memory_space<vmem>>, vector<16x32xf32>
    tpu.vector_store %arg8[%c0_17, %c0_18], %19 {strides = array<i32>} : memref<16x32xf32, #tpu.memory_space<vmem>>, vector<16x32xf32>,
    return
  }
  func.func @transform_0(%arg0: i32) -> (i32, i32) {
    %c0_i32 = arith.constant 0 : i32
    %c0_i32_0 = arith.constant 0 : i32
    return %arg0, %c0_i32 : i32, i32
  }
  func.func @transform_1(%arg0: i32) -> (i32, i32) {
    %c0_i32 = arith.constant 0 : i32
    %c0_i32_0 = arith.constant 0 : i32
    %c0_i32_1 = arith.constant 0 : i32
    return %c0_i32, %c0_i32_0 : i32, i32
  }
  func.func @transform_2(%arg0: i32) -> (i32, i32) {
    %c0_i32 = arith.constant 0 : i32
    %c0_i32_0 = arith.constant 0 : i32
    %c0_i32_1 = arith.constant 0 : i32
    return %c0_i32, %c0_i32_0 : i32, i32
  }
  func.func @transform_3(%arg0: i32) -> (i32, i32) {
    %c0_i32 = arith.constant 0 : i32
    %c0_i32_0 = arith.constant 0 : i32
    %c0_i32_1 = arith.constant 0 : i32
    return %c0_i32, %c0_i32_0 : i32, i32
  }
  func.func @transform_4(%arg0: i32) -> (i32, i32) {
    %c0_i32 = arith.constant 0 : i32
    %c0_i32_0 = arith.constant 0 : i32
    %c0_i32_1 = arith.constant 0 : i32
    return %c0_i32, %c0_i32_0 : i32, i32
  }
  func.func @transform_5(%arg0: i32) -> (i32, i32) {
    %c0_i32 = arith.constant 0 : i32
    %c0_i32_0 = arith.constant 0 : i32
    %c0_i32_1 = arith.constant 0 : i32
    return %c0_i32, %c0_i32_0 : i32, i32
  }
  func.func @transform_6(%arg0: i32) -> (i32, i32) {
    %c0_i32 = arith.constant 0 : i32
    %c0_i32_0 = arith.constant 0 : i32
    %c0_i32_1 = arith.constant 0 : i32
    return %c0_i32, %c0_i32_0 : i32, i32
  }
  func.func @transform_7(%arg0: i32) -> (i32, i32) {
    %c0_i32 = arith.constant 0 : i32
    %c0_i32_0 = arith.constant 0 : i32
    return %arg0, %c0_i32 : i32, i32
  }
}

</mosaic_0001>

<llo_original>
// kernel: feedforward_pallas.1
$region0: #{feedforward_pallas.1}
  #allocation0 [shape = 'u32[]', space=smem, size = 0x4, offset = 0x4, fixed_abs, tag = 'smem constant byte address 0x4 - core index']
  #allocation1 [shape = 'u32[144,128]{1,0:T(1,128)}', space=vmem, size = 0x12000, scoped, tag = 'internal scratch']
  %s0 = inlined_call_operand.hbm [shape: f32[16,32], index: 0, kind: input, shape index: {}]
  %s1 = inlined_call_operand.vmem [shape: f32[32,128], index: 1, kind: input, shape index: {}]
  %s2 = inlined_call_operand.vmem [shape: f32[1,128], index: 2, kind: input, shape index: {}]
  %s3 = inlined_call_operand.vmem [shape: f32[128,128], index: 3, kind: input, shape index: {}]
  %s4 = inlined_call_operand.vmem [shape: f32[1,128], index: 4, kind: input, shape index: {}]
  %s5 = inlined_call_operand.vmem [shape: f32[128,32], index: 5, kind: input, shape index: {}]
  %s6 = inlined_call_operand.vmem [shape: f32[1,32], index: 6, kind: input, shape index: {}]
  %s7 = inlined_call_operand.hbm [shape: f32[16,32], index: 7, kind: output, shape index: {}]
  %s8 = sld [smem:[#allocation0]]
  $region42: #{feedforward_pallas.1} parent=0
    _
  %s10 = ssub.s32 1, %s8
  %s11 = scalar_select 0, %s10, %s8
  $region1: #{feedforward_pallas.1} parent=0
    #allocation2 [shape = 'u8[8192]{0}', space=vmem, size = 0x2000, scoped, tag = 'input window, operand 0, single buffered']
    #allocation3 [shape = 's32[1]{0}', space=sflag, size = 0x4, scoped, tag = 'scoped memory for feedforward_pallas.1']
    #allocation4 [shape = 's32[1]{0}', space=sflag, size = 0x4, scoped, tag = 'scoped memory for feedforward_pallas.1']
    #allocation5 [shape = 'u8[8192]{0}', space=vmem, size = 0x2000, scoped, tag = 'output window, operand 0, single buffered']
    %12 = vsyncpa [#allocation3], 0
    %13 = vsyncpa [#allocation4], 0
    // Predicated region
    $region2: #{feedforward_pallas.1} parent=1 // pred_check
      _
    $region3: #{feedforward_pallas.1} parent=1 // pred_check_branch
      %15 = sbr.rel (0) target = $region5
    $region4: #{feedforward_pallas.1} parent=1 // pred_region
      %s17 = ssub.s32 256, 256
      %18 = vsyncadd [#allocation3], %s17
      %s19 = sshll.u32 [#allocation2], 4
      %s20 = int_to_ptr.vmem [resolvable:$true] %s19
      %25 = dma.hbm_to_vmem [thread:$0]  %s0, 256, %s20, [#allocation3], 128, 128, 8
    $region5: #{feedforward_pallas.1} parent=1 // pred_fallthru
      _
    // Predicated region
    $region6: #{feedforward_pallas.1} parent=1 // pred_check
      _
    $region7: #{feedforward_pallas.1} parent=1 // pred_check_branch
      %27 = sbr.rel (0) target = $region9
    $region8: #{feedforward_pallas.1} parent=1 // pred_region
      _
    $region9: #{feedforward_pallas.1} parent=1 // pred_fallthru
      _
    // Predicated region
    $region10: #{feedforward_pallas.1} parent=1 // pred_check
      _
    $region11: #{feedforward_pallas.1} parent=1 // pred_check_branch
      %29 = sbr.rel (0) target = $region13
    $region12: #{feedforward_pallas.1} parent=1 // pred_region
      _
    $region13: #{feedforward_pallas.1} parent=1 // pred_fallthru
      _
    // Predicated region
    $region14: #{feedforward_pallas.1} parent=1 // pred_check
      _
    $region15: #{feedforward_pallas.1} parent=1 // pred_check_branch
      %31 = sbr.rel (0) target = $region17
    $region16: #{feedforward_pallas.1} parent=1 // pred_region
      _
    $region17: #{feedforward_pallas.1} parent=1 // pred_fallthru
      _
    // Predicated region
    $region18: #{feedforward_pallas.1} parent=1 // pred_check
      _
    $region19: #{feedforward_pallas.1} parent=1 // pred_check_branch
      %33 = sbr.rel (0) target = $region21
    $region20: #{feedforward_pallas.1} parent=1 // pred_region
      _
    $region21: #{feedforward_pallas.1} parent=1 // pred_fallthru
      _
    // Predicated region
    $region22: #{feedforward_pallas.1} parent=1 // pred_check
      _
    $region23: #{feedforward_pallas.1} parent=1 // pred_check_branch
      %35 = sbr.rel (0) target = $region25
    $region24: #{feedforward_pallas.1} parent=1 // pred_region
      _
    $region25: #{feedforward_pallas.1} parent=1 // pred_fallthru
      _
    // Predicated region
    $region26: #{feedforward_pallas.1} parent=1 // pred_check
      _
    $region27: #{feedforward_pallas.1} parent=1 // pred_check_branch
      %37 = sbr.rel (0) target = $region29
    $region28: #{feedforward_pallas.1} parent=1 // pred_region
      _
    $region29: #{feedforward_pallas.1} parent=1 // pred_fallthru
      _
    // Predicated region
    $region30: #{feedforward_pallas.1} parent=1 // pred_check
      _
    $region31: #{feedforward_pallas.1} parent=1 // pred_check_branch
      %39 = sbr.rel (0) target = $region33
    $region32: #{feedforward_pallas.1} parent=1 // pred_region
      %40 = dma.done [#allocation3], 256
    $region33: #{feedforward_pallas.1} parent=1 // pred_fallthru
      _
    %v41 = vld [vmem:[#allocation2] sm:$0xff]
    %v42 = vld [vmem:[#allocation2 + $0x8] sm:$0xff]
    %v43 = vld [vmem:[%s1] sm:$0xff]
    %v44 = vld [vmem:[%s1 + $0x8] sm:$0xff]
    %v45 = vld [vmem:[%s1 + $0x10] sm:$0xff]
    %v46 = vld [vmem:[%s1 + $0x18] sm:$0xff]
    %v47 = vld [vmem:[%s2] sm:$0x1]
    %v49 = vlaneseq
    %v50 = vshrl.u32 %v49, 7
    %v51 = vsub.s32 0, %v50
    %v52 = vrot.slane %v47, %v51
    %vm54 = vcmask 261120
    %v56 = vsel %vm54, %v41, 0
    %v59 = vsel %vm54, %v42, 0
    %61 = vmatprep.subr.mxu0 0.0
    %62 = vmatpush1.msra.mxu0 %v43
    %63 = vmatprep.subr.mxu0 0.0
    %64 = vmatpush1.msra.mxu0 %v44
    %65 = vmatprep.subr.mxu0 0.0
    %66 = vmatpush1.msra.mxu0 %v45
    %67 = vmatprep.subr.mxu0 0.0
    %68 = vmatpush1.msra.mxu0 %v46
    %69 = vmatprep.subr.mxu0 0.0
    %70 = vmatpush1.msra.mxu0 0.0
    %71 = vmatprep.subr.mxu0 0.0
    %72 = vmatpush1.msra.mxu0 0.0
    %73 = vmatprep.subr.mxu0 0.0
    %74 = vmatpush1.msra.mxu0 0.0
    %75 = vmatprep.subr.mxu0 0.0
    %76 = vmatpush1.msra.mxu0 0.0
    %77 = vmatprep.subr.mxu0 0.0
    %78 = vmatpush1.msra.mxu0 0.0
    %79 = vmatprep.subr.mxu0 0.0
    %80 = vmatpush1.msra.mxu0 0.0
    %81 = vmatprep.subr.mxu0 0.0
    %82 = vmatpush1.msra.mxu0 0.0
    %83 = vmatprep.subr.mxu0 0.0
    %84 = vmatpush1.msra.mxu0 0.0
    %85 = vmatprep.subr.mxu0 0.0
    %86 = vmatpush1.msra.mxu0 0.0
    %87 = vmatprep.subr.mxu0 0.0
    %88 = vmatpush1.msra.mxu0 0.0
    %89 = vmatprep.subr.mxu0 0.0
    %90 = vmatpush1.msra.mxu0 0.0
    %91 = vmatprep.subr.mxu0 0.0
    %92 = vmatpush1.msra.mxu0 0.0
    %93 = vmatprep.subr.mxu0 0.0
    %94 = vmatpush1.msra.mxu0 0.0
    %95 = vmatprep.subr.mxu0 0.0
    %96 = vmatpush1.msra.mxu0 0.0
    %97 = vmatprep.subr.mxu0 0.0
    %98 = vmatpush1.msra.mxu0 0.0
    %99 = vmatprep.subr.mxu0 0.0
    %100 = vmatpush1.msra.mxu0 0.0
    %101 = vmatprep.subr.mxu0 0.0
    %102 = vmatpush1.msra.mxu0 0.0
    %103 = vmatprep.subr.mxu0 0.0
    %104 = vmatpush1.msra.mxu0 0.0
    %105 = vmatprep.subr.mxu0 0.0
    %106 = vmatpush1.msra.mxu0 0.0
    %107 = vmatprep.subr.mxu0 0.0
    %108 = vmatpush1.msra.mxu0 0.0
    %109 = vmatprep.subr.mxu0 0.0
    %110 = vmatpush1.msra.mxu0 0.0
    %111 = vmatprep.subr.mxu0 0.0
    %112 = vmatpush1.msra.mxu0 0.0
    %113 = vmatprep.subr.mxu0 0.0
    %114 = vmatpush1.msra.mxu0 0.0
    %115 = vmatprep.subr.mxu0 0.0
    %116 = vmatpush1.msra.mxu0 0.0
    %117 = vmatprep.subr.mxu0 0.0
    %118 = vmatpush1.msra.mxu0 0.0
    %119 = vmatprep.subr.mxu0 0.0
    %120 = vmatpush1.msra.mxu0 0.0
    %121 = vmatprep.subr.mxu0 0.0
    %122 = vmatpush1.msra.mxu0 0.0
    %123 = vmatprep.subr.mxu0 0.0
    %124 = vmatpush1.msra.mxu0 0.0
    %125 = vmatprep.mubr.f32.mxu0 0.0
    %126 = vmatmul.mubr.f32.gmra.mrb[0].mxu0 %v56
    %v127 = vpop.f32.mrb[0].mxu0
    %v128 = vadd.f32 %v52, %v127
    %v129 = vpop.f32.mrb[0].mxu0
    %130 = vmatprep.mubr.f32.mxu0 0.0
    %131 = vmatmul.mubr.f32.gmra.mrb[0].mxu0 %v59
    %v132 = vpop.f32.mrb[0].mxu0
    %v133 = vadd.f32 %v52, %v132
    %v134 = vpop.f32.mrb[0].mxu0
    %135 = vdwg.mxu0
    %v136 = vmax.f32 %v128, 0.0
    %v137 = vmax.f32 %v133, 0.0
    %v138 = vld [vmem:[%s3] sm:$0xff]
    %v139 = vld [vmem:[%s3 + $0x8] sm:$0xff]
    %v140 = vld [vmem:[%s3 + $0x10] sm:$0xff]
    %v141 = vld [vmem:[%s3 + $0x18] sm:$0xff]
    %v142 = vld [vmem:[%s3 + $0x20] sm:$0xff]
    %v143 = vld [vmem:[%s3 + $0x28] sm:$0xff]
    %v144 = vld [vmem:[%s3 + $0x30] sm:$0xff]
    %v145 = vld [vmem:[%s3 + $0x38] sm:$0xff]
    %v146 = vld [vmem:[%s3 + $0x40] sm:$0xff]
    %v147 = vld [vmem:[%s3 + $0x48] sm:$0xff]
    %v148 = vld [vmem:[%s3 + $0x50] sm:$0xff]
    %v149 = vld [vmem:[%s3 + $0x58] sm:$0xff]
    %v150 = vld [vmem:[%s3 + $0x60] sm:$0xff]
    %v151 = vld [vmem:[%s3 + $0x68] sm:$0xff]
    %v152 = vld [vmem:[%s3 + $0x70] sm:$0xff]
    %v153 = vld [vmem:[%s3 + $0x78] sm:$0xff]
    %v154 = vld [vmem:[%s4] sm:$0x1]
    %v156 = vlaneseq
    %v157 = vshrl.u32 %v156, 7
    %v158 = vsub.s32 0, %v157
    %v159 = vrot.slane %v154, %v158
    %161 = vmatprep.subr.mxu0 0.0
    %162 = vmatpush1.msra.mxu0 %v138
    %163 = vmatprep.subr.mxu0 0.0
    %164 = vmatpush1.msra.mxu0 %v139
    %165 = vmatprep.subr.mxu0 0.0
    %166 = vmatpush1.msra.mxu0 %v140
    %167 = vmatprep.subr.mxu0 0.0
    %168 = vmatpush1.msra.mxu0 %v141
    %169 = vmatprep.subr.mxu0 0.0
    %170 = vmatpush1.msra.mxu0 %v142
    %171 = vmatprep.subr.mxu0 0.0
    %172 = vmatpush1.msra.mxu0 %v143
    %173 = vmatprep.subr.mxu0 0.0
    %174 = vmatpush1.msra.mxu0 %v144
    %175 = vmatprep.subr.mxu0 0.0
    %176 = vmatpush1.msra.mxu0 %v145
    %177 = vmatprep.subr.mxu0 0.0
    %178 = vmatpush1.msra.mxu0 %v146
    %179 = vmatprep.subr.mxu0 0.0
    %180 = vmatpush1.msra.mxu0 %v147
    %181 = vmatprep.subr.mxu0 0.0
    %182 = vmatpush1.msra.mxu0 %v148
    %183 = vmatprep.subr.mxu0 0.0
    %184 = vmatpush1.msra.mxu0 %v149
    %185 = vmatprep.subr.mxu0 0.0
    %186 = vmatpush1.msra.mxu0 %v150
    %187 = vmatprep.subr.mxu0 0.0
    %188 = vmatpush1.msra.mxu0 %v151
    %189 = vmatprep.subr.mxu0 0.0
    %190 = vmatpush1.msra.mxu0 %v152
    %191 = vmatprep.subr.mxu0 0.0
    %192 = vmatpush1.msra.mxu0 %v153
    %193 = vmatprep.subr.mxu0 0.0
    %194 = vmatpush1.msra.mxu0 0.0
    %195 = vmatprep.subr.mxu0 0.0
    %196 = vmatpush1.msra.mxu0 0.0
    %197 = vmatprep.subr.mxu0 0.0
    %198 = vmatpush1.msra.mxu0 0.0
    %199 = vmatprep.subr.mxu0 0.0
    %200 = vmatpush1.msra.mxu0 0.0
    %201 = vmatprep.subr.mxu0 0.0
    %202 = vmatpush1.msra.mxu0 0.0
    %203 = vmatprep.subr.mxu0 0.0
    %204 = vmatpush1.msra.mxu0 0.0
    %205 = vmatprep.subr.mxu0 0.0
    %206 = vmatpush1.msra.mxu0 0.0
    %207 = vmatprep.subr.mxu0 0.0
    %208 = vmatpush1.msra.mxu0 0.0
    %209 = vmatprep.subr.mxu0 0.0
    %210 = vmatpush1.msra.mxu0 0.0
    %211 = vmatprep.subr.mxu0 0.0
    %212 = vmatpush1.msra.mxu0 0.0
    %213 = vmatprep.subr.mxu0 0.0
    %214 = vmatpush1.msra.mxu0 0.0
    %215 = vmatprep.subr.mxu0 0.0
    %216 = vmatpush1.msra.mxu0 0.0
    %217 = vmatprep.subr.mxu0 0.0
    %218 = vmatpush1.msra.mxu0 0.0
    %219 = vmatprep.subr.mxu0 0.0
    %220 = vmatpush1.msra.mxu0 0.0
    %221 = vmatprep.subr.mxu0 0.0
    %222 = vmatpush1.msra.mxu0 0.0
    %223 = vmatprep.subr.mxu0 0.0
    %224 = vmatpush1.msra.mxu0 0.0
    %225 = vmatprep.mubr.f32.mxu0 0.0
    %226 = vmatmul.mubr.f32.gmra.mrb[0].mxu0 %v136
    %v227 = vpop.f32.mrb[0].mxu0
    %v228 = vadd.f32 %v159, %v227
    %v229 = vpop.f32.mrb[0].mxu0
    %230 = vmatprep.mubr.f32.mxu0 0.0
    %231 = vmatmul.mubr.f32.gmra.mrb[0].mxu0 %v137
    %v232 = vpop.f32.mrb[0].mxu0
    %v233 = vadd.f32 %v159, %v232
    %v234 = vpop.f32.mrb[0].mxu0
    %235 = vdwg.mxu0
    %v236 = vmax.f32 %v228, 0.0
    %v237 = vmax.f32 %v233, 0.0
    %v238 = vld [vmem:[%s5] sm:$0xff]
    %v239 = vld [vmem:[%s5 + $0x8] sm:$0xff]
    %v240 = vld [vmem:[%s5 + $0x10] sm:$0xff]
    %v241 = vld [vmem:[%s5 + $0x18] sm:$0xff]
    %v242 = vld [vmem:[%s5 + $0x20] sm:$0xff]
    %v243 = vld [vmem:[%s5 + $0x28] sm:$0xff]
    %v244 = vld [vmem:[%s5 + $0x30] sm:$0xff]
    %v245 = vld [vmem:[%s5 + $0x38] sm:$0xff]
    %v246 = vld [vmem:[%s5 + $0x40] sm:$0xff]
    %v247 = vld [vmem:[%s5 + $0x48] sm:$0xff]
    %v248 = vld [vmem:[%s5 + $0x50] sm:$0xff]
    %v249 = vld [vmem:[%s5 + $0x58] sm:$0xff]
    %v250 = vld [vmem:[%s5 + $0x60] sm:$0xff]
    %v251 = vld [vmem:[%s5 + $0x68] sm:$0xff]
    %v252 = vld [vmem:[%s5 + $0x70] sm:$0xff]
    %v253 = vld [vmem:[%s5 + $0x78] sm:$0xff]
    %v254 = vld [vmem:[%s6] sm:$0x1]
    %v256 = vlaneseq
    %v257 = vshrl.u32 %v256, 7
    %v258 = vsub.s32 0, %v257
    %v259 = vrot.slane %v254, %v258
    %261 = vmatprep.subr.mxu0 0.0
    %262 = vmatpush1.msra.mxu0 %v238
    %263 = vmatprep.subr.mxu0 0.0
    %264 = vmatpush1.msra.mxu0 %v239
    %265 = vmatprep.subr.mxu0 0.0
    %266 = vmatpush1.msra.mxu0 %v240
    %267 = vmatprep.subr.mxu0 0.0
    %268 = vmatpush1.msra.mxu0 %v241
    %269 = vmatprep.subr.mxu0 0.0
    %270 = vmatpush1.msra.mxu0 %v242
    %271 = vmatprep.subr.mxu0 0.0
    %272 = vmatpush1.msra.mxu0 %v243
    %273 = vmatprep.subr.mxu0 0.0
    %274 = vmatpush1.msra.mxu0 %v244
    %275 = vmatprep.subr.mxu0 0.0
    %276 = vmatpush1.msra.mxu0 %v245
    %277 = vmatprep.subr.mxu0 0.0
    %278 = vmatpush1.msra.mxu0 %v246
    %279 = vmatprep.subr.mxu0 0.0
    %280 = vmatpush1.msra.mxu0 %v247
    %281 = vmatprep.subr.mxu0 0.0
    %282 = vmatpush1.msra.mxu0 %v248
    %283 = vmatprep.subr.mxu0 0.0
    %284 = vmatpush1.msra.mxu0 %v249
    %285 = vmatprep.subr.mxu0 0.0
    %286 = vmatpush1.msra.mxu0 %v250
    %287 = vmatprep.subr.mxu0 0.0
    %288 = vmatpush1.msra.mxu0 %v251
    %289 = vmatprep.subr.mxu0 0.0
    %290 = vmatpush1.msra.mxu0 %v252
    %291 = vmatprep.subr.mxu0 0.0
    %292 = vmatpush1.msra.mxu0 %v253
    %293 = vmatprep.subr.mxu0 0.0
    %294 = vmatpush1.msra.mxu0 0.0
    %295 = vmatprep.subr.mxu0 0.0
    %296 = vmatpush1.msra.mxu0 0.0
    %297 = vmatprep.subr.mxu0 0.0
    %298 = vmatpush1.msra.mxu0 0.0
    %299 = vmatprep.subr.mxu0 0.0
    %300 = vmatpush1.msra.mxu0 0.0
    %301 = vmatprep.subr.mxu0 0.0
    %302 = vmatpush1.msra.mxu0 0.0
    %303 = vmatprep.subr.mxu0 0.0
    %304 = vmatpush1.msra.mxu0 0.0
    %305 = vmatprep.subr.mxu0 0.0
    %306 = vmatpush1.msra.mxu0 0.0
    %307 = vmatprep.subr.mxu0 0.0
    %308 = vmatpush1.msra.mxu0 0.0
    %309 = vmatprep.subr.mxu0 0.0
    %310 = vmatpush1.msra.mxu0 0.0
    %311 = vmatprep.subr.mxu0 0.0
    %312 = vmatpush1.msra.mxu0 0.0
    %313 = vmatprep.subr.mxu0 0.0
    %314 = vmatpush1.msra.mxu0 0.0
    %315 = vmatprep.subr.mxu0 0.0
    %316 = vmatpush1.msra.mxu0 0.0
    %317 = vmatprep.subr.mxu0 0.0
    %318 = vmatpush1.msra.mxu0 0.0
    %319 = vmatprep.subr.mxu0 0.0
    %320 = vmatpush1.msra.mxu0 0.0
    %321 = vmatprep.subr.mxu0 0.0
    %322 = vmatpush1.msra.mxu0 0.0
    %323 = vmatprep.subr.mxu0 0.0
    %324 = vmatpush1.msra.mxu0 0.0
    %325 = vmatprep.mubr.f32.mxu0 0.0
    %326 = vmatmul.mubr.f32.gmra.mrb[0].mxu0 %v236
    %v327 = vpop.f32.mrb[0].mxu0
    %v328 = vadd.f32 %v259, %v327
    %v329 = vpop.f32.mrb[0].mxu0
    %330 = vmatprep.mubr.f32.mxu0 0.0
    %331 = vmatmul.mubr.f32.gmra.mrb[0].mxu0 %v237
    %v332 = vpop.f32.mrb[0].mxu0
    %v333 = vadd.f32 %v259, %v332
    %v334 = vpop.f32.mrb[0].mxu0
    %335 = vdwg.mxu0
    %336 = vst.msk [vmem:[#allocation5] sm:$0xff] %vm54, %v328
    %337 = vst.msk [vmem:[#allocation5 + $0x8] sm:$0xff] %vm54, %v333
    // Predicated region
    $region34: #{feedforward_pallas.1} parent=1 // pred_check
      _
    $region35: #{feedforward_pallas.1} parent=1 // pred_check_branch
      %339 = sbr.rel (0) target = $region37
    $region36: #{feedforward_pallas.1} parent=1 // pred_region
      %s341 = ssub.s32 256, 256
      %342 = vsyncadd [#allocation4], %s341
      %s343 = sshll.u32 [#allocation5], 4
      %s344 = int_to_ptr.vmem [resolvable:$true] %s343
      %349 = dma.vmem_to_hbm [thread:$0]  %s344, 256, %s7, [#allocation4], 128, 128, 8
    $region37: #{feedforward_pallas.1} parent=1 // pred_fallthru
      _
    // Predicated region
    $region38: #{feedforward_pallas.1} parent=1 // pred_check
      _
    $region39: #{feedforward_pallas.1} parent=1 // pred_check_branch
      %351 = sbr.rel (0) target = $region41
    $region40: #{feedforward_pallas.1} parent=1 // pred_region
      %352 = dma.done [#allocation4], 256
    $region41: #{feedforward_pallas.1} parent=1 // pred_fallthru
      _
    %353 = vsyncpa [#allocation3], 1
    %354 = vsyncpa [#allocation4], 1

</llo_original>
